<compile_context>
chip_gen: v6e
topology: v6e:2x2x1
jax: 0.10.0
libtpu: 0.0.40
codegen_flags: <defaults>
</compile_context>

<pallas_src>
import jax
import jax.numpy as jnp
from jax.experimental import pallas as pl
from jax.experimental.pallas import tpu as pltpu


def _dma_copy_kernel(x_hbm, o_hbm, sem):
    # One HBM->HBM DMA of this grid step's slab. No VMEM staging: the DMA
    # engine alone sits at the HBM roofline for an identity copy.
    i = pl.program_id(0)
    cp = pltpu.make_async_copy(x_hbm.at[i], o_hbm.at[i], sem)
    cp.start()
    cp.wait()


# Lane-dense candidate widths (multiples of 128), widest first.
_LANE_WIDTHS = (4096, 2048, 1024, 512, 384, 256, 128)

# Cap per-DMA chunk size; chunking also gives v7x's two TensorCores one slab
# each when the row count allows.
_MAX_CHUNK_BYTES = 32 * 1024 * 1024


def _pick_lane_width(total: int):
    """Widest multiple-of-128 width dividing `total`, preferring rows >= 8."""
    fallback = None
    for w in _LANE_WIDTHS:
        if total % w == 0:
            if total // w >= 8:
                return w
            if fallback is None:
                fallback = w
    return fallback


def _pick_chunks(rows: int, want: int) -> int:
    """Largest divisor of `rows` <= `want`, preferring chunks whose row count
    stays a multiple of 8 (keeps DMA slabs aligned to the (8,128) HBM tiling)."""
    cap = max(1, min(rows, want))
    aligned = [g for g in range(1, cap + 1) if rows % g == 0 and (rows // g) % 8 == 0]
    if aligned:
        return max(aligned)
    divisors = [g for g in range(1, cap + 1) if rows % g == 0]
    return max(divisors) if divisors else 1


def _pallas_copy_2d(x2d: jax.Array) -> jax.Array:
    """Chunked HBM->HBM DMA copy of a row-major (rows, width) slab."""
    rows, width = x2d.shape
    itemsize = jnp.dtype(x2d.dtype).itemsize
    nbytes = rows * width * itemsize

    # Chunk count: at least 2 (v7x megacore) when rows allow, and enough that
    # no single DMA exceeds ~_MAX_CHUNK_BYTES.
    want = max(2, (nbytes + _MAX_CHUNK_BYTES - 1) // _MAX_CHUNK_BYTES)
    g = _pick_chunks(rows, want)
    x3d = jnp.reshape(x2d, (g, rows // g, width))

    y3d = pl.pallas_call(
        _dma_copy_kernel,
        out_shape=jax.ShapeDtypeStruct(x3d.shape, x3d.dtype),
        grid=(g,),
        in_specs=[pl.BlockSpec(memory_space=pl.ANY)],
        out_specs=pl.BlockSpec(memory_space=pl.ANY),
        scratch_shapes=[pltpu.SemaphoreType.DMA(())],
        compiler_params=pltpu.CompilerParams(
            # Disjoint chunks: lets v7x shard the DMAs across its 2 TensorCores.
            dimension_semantics=("parallel",),
        ),
        # Correct mem-bound cost hint for XLA's scheduler (read + write).
        cost_estimate=pl.CostEstimate(
            flops=0, transcendentals=0, bytes_accessed=2 * nbytes),
    )(x3d)
    return jnp.reshape(y3d, (rows, width))


def pallas_view(x: jax.Array, o: int) -> jax.Array:
    """Equivalent of torch `x.view(-1, o)` with the copy done by a Pallas kernel."""
    total = x.size
    if o <= 0 or total % o != 0:
        raise ValueError(f"cannot view {x.shape} as (-1, {o})")
    m = total // o

    if total == 0:
        return jnp.reshape(x, (m, o))

    # TODO(synk): if the caller can donate x, skip the copy entirely
    # (input_output_aliases / plain reshape) — a view is a metadata op. We keep
    # fresh-buffer copy semantics here.

    # Re-block the copy lane-dense: an identity copy preserves element order
    # under any row-major reshape, so pick the widest multiple-of-128 width
    # dividing the element count (with rows >= 8 when possible). HBM->HBM DMAs
    # have no masked-store penalty, but a wide aligned trailing dim keeps the
    # DMA descriptors simple and dense.
    w = _pick_lane_width(total)
    if w is not None:
        x2d = jnp.reshape(x, (total // w, w))
    else:
        # No multiple-of-128 factor: copy on the user-facing (m, o) shape; the
        # raw DMA path does not hit masked vst partial stores for narrow widths.
        x2d = jnp.reshape(x, (m, o))

    y2d = _pallas_copy_2d(x2d)
    # Free metadata reshape back to the view's user-facing shape.
    return jnp.reshape(y2d, (m, o))


if __name__ == "__main__":
    key = jax.random.PRNGKey(0)
    # Module parameter: o (target trailing dim of the view).
    o = 32
    # Example input consistent with an NCHW conv-style tensor: (2, 4, 16, 16).
    x = jax.random.normal(key, (2, 4, 16, 16), dtype=jnp.float32)

    y = pallas_view(x, o)
    jax.block_until_ready(y)

    # Reference check against plain JAX reshape (same semantics as torch.view).
    y_ref = jnp.reshape(x, (-1, o))
    assert y.shape == (x.size // o, o), y.shape
    assert jnp.array_equal(y, y_ref), "mismatch vs reference reshape"

    print("KERNEL_OK")
</pallas_src>

<mosaic_0001>
module attributes {stable_mosaic.version = 11 : i64} {
  func.func @_dma_copy_kernel(%arg0: i32, %arg1: memref<1x8x256xf32, #tpu.memory_space<any>>, %arg2: memref<1x8x256xf32, #tpu.memory_space<any>>, %arg3: memref<!tpu.dma_semaphore, #tpu.memory_space<semaphore_mem>>) attributes {dimension_semantics = [#tpu.dimension_semantics<parallel>], iteration_bounds = array<i64: 1>, scalar_prefetch = 0 : i64, scratch_operands = 1 : i64, tpu.core_type = #tpu.core_type<tc>, window_params = [{}, {}]} {
    %c0_i32 = arith.constant 0 : i32
    %c0_i32_0 = arith.constant 0 : i32
    %0 = tpu.memref_slice %arg1[%arg0, %c0_i32, %c0_i32_0] : memref<1x8x256xf32, #tpu.memory_space<any>> -> memref<1x8x256xf32, #tpu.memory_space<any>>
    %1 = tpu.memref_squeeze %0 : memref<1x8x256xf32, #tpu.memory_space<any>> -> memref<8x256xf32, #tpu.memory_space<any>>
    %c0_i32_1 = arith.constant 0 : i32
    %c0_i32_2 = arith.constant 0 : i32
    %2 = tpu.memref_slice %arg2[%arg0, %c0_i32_1, %c0_i32_2] : memref<1x8x256xf32, #tpu.memory_space<any>> -> memref<1x8x256xf32, #tpu.memory_space<any>>
    %3 = tpu.memref_squeeze %2 : memref<1x8x256xf32, #tpu.memory_space<any>> -> memref<8x256xf32, #tpu.memory_space<any>>
    tpu.enqueue_dma source(%1 : memref<8x256xf32, #tpu.memory_space<any>>) target(%3 : memref<8x256xf32, #tpu.memory_space<any>>) target_semaphore(%arg3 : memref<!tpu.dma_semaphore, #tpu.memory_space<semaphore_mem>>)
    %c0_i32_3 = arith.constant 0 : i32
    %c0_i32_4 = arith.constant 0 : i32
    %4 = tpu.memref_slice %arg1[%arg0, %c0_i32_3, %c0_i32_4] : memref<1x8x256xf32, #tpu.memory_space<any>> -> memref<1x8x256xf32, #tpu.memory_space<any>>
    %5 = tpu.memref_squeeze %4 : memref<1x8x256xf32, #tpu.memory_space<any>> -> memref<8x256xf32, #tpu.memory_space<any>>
    %c0_i32_5 = arith.constant 0 : i32
    %c0_i32_6 = arith.constant 0 : i32
    %6 = tpu.memref_slice %arg2[%arg0, %c0_i32_5, %c0_i32_6] : memref<1x8x256xf32, #tpu.memory_space<any>> -> memref<1x8x256xf32, #tpu.memory_space<any>>
    %7 = tpu.memref_squeeze %6 : memref<1x8x256xf32, #tpu.memory_space<any>> -> memref<8x256xf32, #tpu.memory_space<any>>
    tpu.wait_dma2 semaphore(%arg3 : memref<!tpu.dma_semaphore, #tpu.memory_space<semaphore_mem>>) src(%5 : memref<8x256xf32, #tpu.memory_space<any>>) dst(%7 : memref<8x256xf32, #tpu.memory_space<any>>)
    return
  }
}

</mosaic_0001>

<llo_original>
// kernel: tpu_custom_call.1
$region0: #{tpu_custom_call.1}
  #allocation0 [shape = 'u32[]', space=smem, size = 0x4, offset = 0x4, fixed_abs, tag = 'smem constant byte address 0x4 - core index']
  #allocation1 [shape = 'u32[144,128]{1,0:T(1,128)}', space=vmem, size = 0x12000, scoped, tag = 'internal scratch']
  #allocation2 [shape = 's32[1]{0}', space=sflag, size = 0x4, scoped, tag = 'scratch operand']
  #allocation3 [shape = 's32[]', space=sflag, size = 0x4, offset = 0, fixed_abs, tag = 'sflag constant byte address 0x0 - dummy sync flag']
  #allocation4 [shape = 'u32[0]{0}', space=smem, size = 0, offset = 0, fixed_abs, tag = 'smem constant byte address 0x0 - null']
  %s0 = inlined_call_operand.hbm [shape: f32[1,8,256], index: 0, kind: input, shape index: {}]
  %s1 = inlined_call_operand.hbm [shape: f32[1,8,256], index: 1, kind: output, shape index: {}]
  %s2 = sld [smem:[#allocation0]]
  $region2: #{tpu_custom_call.1} parent=0
    _
  %s4 = ssub.s32 1, %s2
  %s5 = scalar_select 0, %s4, %s2
  %s6 = smul.u32 0, 2
  %s7 = smul.addr %s6, 128
  %s8 = scalar_lea.hbm %s0, %s7
  %s9 = smul.addr %s6, 128
  %s10 = scalar_lea.hbm %s1, %s9
  %s12 = sshll.u32 1, 14
  %s13 = sxor.u32 4294967295, %s12
  %17 = dma.general %s8, 256, %s10, [#allocation2], 131072, [#allocation4], 0, 0
  %s18 = smul.u32 8, 1
  %s19 = smul.u32 %s18, 2
  %s20 = sshll.u32 %s19, 4
  %21 = dma.done [#allocation2], %s20
  %22 = vsyncmov [#allocation2]
  %s23 = vpop.sfrf %22
  %p24 = scmp.eq.s32.totalorder %s23, 0
  %p25 = pneg %p24
  %27 = shalt.err (%p25)

</llo_original>
